<compile_context>
chip_gen: v5e
topology: v5e:2x2
jax: 0.10.0
libtpu: 0.0.40
codegen_flags: <defaults>
</compile_context>

<pallas_src>
import functools

import jax
import jax.numpy as jnp
from jax import lax
from jax.experimental import pallas as pl
from jax.experimental.pallas import tpu as pltpu


# Per-step block budget used when auto-sizing the batch tile.  Kept well under
# v7x's 64 MiB physical VMEM (inputs/outputs are double-buffered by Pallas).
_VMEM_BUDGET_BYTES = 32 * 1024 * 1024


def _tensorcores_per_chip():
    """Best-effort detection of chips with more than one TensorCore."""
    try:
        kind = jax.devices()[0].device_kind.lower()
    except Exception:
        return 1
    if any(tok in kind for tok in ("v7", "7x", "v4", "v5p")):
        return 2
    return 1


def _step_vmem_bytes(bt, n, d, p, in_itemsize):
    """Rough per-grid-step VMEM footprint (Pallas double-buffers each block)."""
    qk = 2 * (2 * bt * n * d * in_itemsize)      # q + k blocks
    out = 2 * (2 * bt * p * p * 4)               # packed f32 output block
    pool = 2 * (p * n * 4)                       # pooling matrix block
    scratch = 2 * bt * p * d * 4                 # sq/sk VMEM scratch (single-buffered)
    return qk + out + pool + scratch


def _diff_topk(logit, iota_last, topk, num_classes):
    """Forward of differentiable_topk along the last axis (any leading dims).

    Mirrors: scatter(topk values) / values_sum - logit.detach() + logit
    (detach is an identity in the forward pass).
    """
    if topk == 1:
        # topk_tensors / values_sum is exactly 1.0 at the arg-max and 0.0
        # elsewhere for any finite non-zero row maximum, so the scatter and the
        # divide can be skipped entirely (degenerate values_sum == 0 rows would
        # produce NaN in the PyTorch code; they cannot occur for generic
        # floating-point inputs).
        v = jnp.max(logit, axis=-1, keepdims=True)
        first = jnp.min(jnp.where(logit == v, iota_last, num_classes),
                        axis=-1, keepdims=True)
        sel = iota_last == first
        return jnp.where(sel, 1.0, 0.0).astype(logit.dtype) - logit + logit

    x = logit
    topk_tensors = jnp.zeros_like(logit)
    values_sum = jnp.zeros(logit.shape[:-1] + (1,), dtype=logit.dtype)
    for it in range(topk):  # static unroll; first-occurrence tie handling
        v = jnp.max(x, axis=-1, keepdims=True)
        first = jnp.min(jnp.where(x == v, iota_last, num_classes),
                        axis=-1, keepdims=True)
        sel = iota_last == first
        topk_tensors = jnp.where(sel, logit, topk_tensors)
        values_sum = values_sum + v
        if it + 1 < topk:  # skip the dead masking pass on the last iteration
            x = jnp.where(sel, -jnp.inf, x)
    # NOTE: values_sum == 0 yields Inf/NaN exactly like the PyTorch code.
    return topk_tensors / values_sum - logit + logit


def ranknet_kernel(pool_ref, q_ref, k_ref, out_ref, sq_ref, sk_ref,
                   *, topk, P, Bt):
    pool = pool_ref[...]                                   # (P, N) f32

    # Patch means via per-item 2-D MXU matmuls, written into VMEM scratch so
    # the rest of the step can run batched over the whole tile.
    for t in range(Bt):                                    # static unroll
        sq_ref[t] = jnp.dot(pool, q_ref[t], preferred_element_type=jnp.float32)
        sk_ref[t] = jnp.dot(pool, k_ref[t], preferred_element_type=jnp.float32)

    sq = sq_ref[...]                                       # (Bt, P, D) f32
    sk = sk_ref[...]                                       # (Bt, P, D) f32

    # Batched correlation over the tile; swapped operands give Corr^T without
    # an XLU transpose.
    corr = jnp.einsum("bid,bjd->bij", sq, sk,
                      preferred_element_type=jnp.float32)   # (Bt, P, P)
    corr_t = jnp.einsum("bid,bjd->bij", sk, sq,
                        preferred_element_type=jnp.float32)  # == corr.T per batch

    # Build the (P, P) iota once per grid step and share it across every
    # diff_topk call (JAX does not CSE broadcast_in_dim).
    iota = lax.broadcasted_iota(jnp.int32, (P, P), 1)

    out_ref[0] = _diff_topk(corr, iota, topk, P)            # R   for the tile
    out_ref[1] = _diff_topk(corr_t, iota, topk, P)          # R_  for the tile


def ranknet_forward(q, k, patch_size, topk=1, batch_block=None):
    b, N, D = q.shape
    w = int(round(N ** 0.5))
    pw = int(round(patch_size ** 0.5))
    if w * w != N:
        raise ValueError(f"N={N} must be a perfect square")
    if pw * pw != patch_size:
        raise ValueError(f"patch_size={patch_size} must be a perfect square")
    if w % pw != 0:
        raise ValueError(f"w={w} must be divisible by patch width {pw}")
    n_patch = w // pw
    P = n_patch * n_patch
    if topk < 1 or topk > P:
        raise ValueError(f"topk={topk} must be in [1, {P}]")

    # Pooling matrix reproducing unfold_bucket(...).mean(dim=2):
    # pool[p, n] = 1/patch_size if pixel n (row-major in the w x w grid) lies
    # in patch p (patches enumerated row-major, matching F.unfold).
    rows = jnp.arange(N) // w
    cols = jnp.arange(N) % w
    patch_of = (rows // pw) * n_patch + (cols // pw)
    pool = (jnp.arange(P)[:, None] == patch_of[None, :]).astype(jnp.float32) / patch_size

    in_itemsize = jnp.dtype(q.dtype).itemsize

    # ---- batch tiling: Bt batches per grid step -------------------------------
    if batch_block is None:
        # One grid step on single-TC chips (v5e/v6e); two on dual-TC chips so
        # both TensorCores get work.  Then shrink to fit the VMEM budget.
        target_blocks = max(1, min(b, _tensorcores_per_chip()))
        Bt = -(-b // target_blocks)
        while Bt > 1 and _step_vmem_bytes(Bt, N, D, P, in_itemsize) > _VMEM_BUDGET_BYTES:
            Bt = max(1, Bt // 2)
    else:
        Bt = max(1, min(int(batch_block), b))
    nb = -(-b // Bt)
    b_pad = nb * Bt
    if b_pad != b:
        pad = b_pad - b
        q = jnp.pad(q, ((0, pad), (0, 0), (0, 0)))
        k = jnp.pad(k, ((0, pad), (0, 0), (0, 0)))

    step_bytes = _step_vmem_bytes(Bt, N, D, P, in_itemsize)
    vmem_limit = int(min(48 << 20, max(32 << 20, step_bytes + (8 << 20))))

    kernel = functools.partial(ranknet_kernel, topk=topk, P=P, Bt=Bt)

    grid_spec = pltpu.PrefetchScalarGridSpec(
        num_scalar_prefetch=0,
        grid=(nb,),
        in_specs=[
            pl.BlockSpec((P, N), lambda i: (0, 0)),          # pool (batch-invariant)
            pl.BlockSpec((Bt, N, D), lambda i: (i, 0, 0)),   # q batch tile
            pl.BlockSpec((Bt, N, D), lambda i: (i, 0, 0)),   # k batch tile
        ],
        # Single packed output (R and R_ share one DMA pipeline); each in-kernel
        # store targets a contiguous (Bt, P, P) slab.
        out_specs=pl.BlockSpec((2, Bt, P, P), lambda i: (0, i, 0, 0)),
        scratch_shapes=[
            pltpu.VMEM((Bt, P, D), jnp.float32),             # sq scratch
            pltpu.VMEM((Bt, P, D), jnp.float32),             # sk scratch
        ],
    )

    packed = pl.pallas_call(
        kernel,
        out_shape=jax.ShapeDtypeStruct((2, b_pad, P, P), jnp.float32),
        grid_spec=grid_spec,
        compiler_params=pltpu.CompilerParams(
            dimension_semantics=("parallel",),
            vmem_limit_bytes=vmem_limit,
        ),
    )(pool, q, k)

    return packed[0, :b], packed[1, :b]


def _reference(q, k, patch_size, topk=1):
    """Pure-JAX reference matching the PyTorch forward."""
    b, N, D = q.shape
    w = int(round(N ** 0.5))
    pw = int(round(patch_size ** 0.5))
    n = w // pw
    P = n * n

    def patch_mean(x):
        x = x.reshape(b, n, pw, n, pw, D)
        return x.mean(axis=(2, 4)).reshape(b, P, D)  # (b, P, D)

    sq = patch_mean(q)
    sk = patch_mean(k)
    corr = jnp.einsum("bid,bjd->bij", sq, sk)

    def dtopk(logit):
        vals, idx = lax.top_k(logit, topk)
        values_sum = vals.sum(-1, keepdims=True)
        onehot = jax.nn.one_hot(idx, logit.shape[-1], dtype=logit.dtype)
        scattered = (onehot * vals[..., None]).sum(-2)
        return scattered / values_sum - logit + logit

    return dtopk(corr), dtopk(jnp.swapaxes(corr, 1, 2))


if __name__ == "__main__":
    key = jax.random.PRNGKey(0)
    b, w, D = 2, 8, 32
    N = w * w                   # 64 tokens
    patch_size = 16             # patch_w = 4 -> n_patch = 2 -> P = 4
    kq, kk = jax.random.split(key)
    q = jax.random.normal(kq, (b, N, D), dtype=jnp.float32)
    k = jax.random.normal(kk, (b, N, D), dtype=jnp.float32)

    # 1) Auto batch-tiling, module-default topk=1 (fast path).
    R, R_ = ranknet_forward(q, k, patch_size=patch_size, topk=1)
    jax.block_until_ready((R, R_))
    R_ref, R__ref = _reference(q, k, patch_size, topk=1)
    assert jnp.allclose(R, R_ref, atol=1e-4, rtol=1e-4)
    assert jnp.allclose(R_, R__ref, atol=1e-4, rtol=1e-4)

    # 2) Forced multi-step grid (one batch per step) must give the same result.
    R2, R2_ = ranknet_forward(q, k, patch_size=patch_size, topk=1, batch_block=1)
    jax.block_until_ready((R2, R2_))
    assert jnp.allclose(R2, R_ref, atol=1e-4, rtol=1e-4)
    assert jnp.allclose(R2_, R__ref, atol=1e-4, rtol=1e-4)

    # 3) Ragged batch (padding path) + general topk > 1 path.
    kq3, kk3 = jax.random.split(jax.random.PRNGKey(1))
    q3 = jax.random.normal(kq3, (3, N, D), dtype=jnp.float32)
    k3 = jax.random.normal(kk3, (3, N, D), dtype=jnp.float32)
    R3, R3_ = ranknet_forward(q3, k3, patch_size=patch_size, topk=2, batch_block=2)
    jax.block_until_ready((R3, R3_))
    R3_ref, R3__ref = _reference(q3, k3, patch_size, topk=2)
    assert jnp.allclose(R3, R3_ref, atol=1e-4, rtol=1e-4)
    assert jnp.allclose(R3_, R3__ref, atol=1e-4, rtol=1e-4)

    print("KERNEL_OK")
</pallas_src>

<mosaic_0001>
module attributes {stable_mosaic.version = 11 : i64} {
  func.func @ranknet_kernel(%arg0: i32, %arg1: memref<4x64xf32, #tpu.memory_space<vmem>>, %arg2: memref<2x64x32xf32, #tpu.memory_space<vmem>>, %arg3: memref<2x64x32xf32, #tpu.memory_space<vmem>>, %arg4: memref<2x2x4x4xf32, #tpu.memory_space<vmem>>, %arg5: memref<2x4x32xf32, #tpu.memory_space<vmem>>, %arg6: memref<2x4x32xf32, #tpu.memory_space<vmem>>) attributes {dimension_semantics = [#tpu.dimension_semantics<parallel>], iteration_bounds = array<i64: 1>, scalar_prefetch = 0 : i64, scratch_operands = 2 : i64, tpu.core_type = #tpu.core_type<tc>, window_params = [{pipeline_mode = #tpu.pipeline_mode<synchronous>, transform_indices = @transform_0, window_bounds = array<i64: 4, 64>}, {transform_indices = @transform_1, window_bounds = array<i64: 2, 64, 32>}, {transform_indices = @transform_2, window_bounds = array<i64: 2, 64, 32>}, {transform_indices = @transform_3, window_bounds = array<i64: 2, 2, 4, 4>}]} {
    %c0 = arith.constant 0 : index
    %c0_0 = arith.constant 0 : index
    %0 = vector.load %arg1[%c0, %c0_0] : memref<4x64xf32, #tpu.memory_space<vmem>>, vector<4x64xf32>
    %c0_1 = arith.constant 0 : index
    %c0_2 = arith.constant 0 : index
    %c0_3 = arith.constant 0 : index
    %1 = vector.load %arg2[%c0_1, %c0_2, %c0_3] : memref<2x64x32xf32, #tpu.memory_space<vmem>>, vector<1x64x32xf32>
    %2 = vector.shape_cast %1 : vector<1x64x32xf32> to vector<64x32xf32>
    %cst = arith.constant dense<0.000000e+00> : vector<4x32xf32>
    %3 = tpu.matmul %0, %2, %cst {dimension_numbers = #tpu.dot_dimension_numbers<[1], [0], [0], [1], [0, 0, 1, 1], [], []>} : vector<4x64xf32>, vector<64x32xf32>, vector<4x32xf32> -> vector<4x32xf32>
    %c0_4 = arith.constant 0 : index
    %c0_5 = arith.constant 0 : index
    %c0_6 = arith.constant 0 : index
    %4 = vector.load %arg5[%c0_4, %c0_5, %c0_6] : memref<2x4x32xf32, #tpu.memory_space<vmem>>, vector<1x4x32xf32>
    %5 = vector.shape_cast %4 : vector<1x4x32xf32> to vector<4x32xf32>
    %6 = vector.shape_cast %3 : vector<4x32xf32> to vector<1x4x32xf32>
    tpu.vector_store %arg5[%c0_4, %c0_5, %c0_6], %6 {strides = array<i32>} : memref<2x4x32xf32, #tpu.memory_space<vmem>>, vector<1x4x32xf32>,
    %c0_7 = arith.constant 0 : index
    %c0_8 = arith.constant 0 : index
    %c0_9 = arith.constant 0 : index
    %7 = vector.load %arg3[%c0_7, %c0_8, %c0_9] : memref<2x64x32xf32, #tpu.memory_space<vmem>>, vector<1x64x32xf32>
    %8 = vector.shape_cast %7 : vector<1x64x32xf32> to vector<64x32xf32>
    %cst_10 = arith.constant dense<0.000000e+00> : vector<4x32xf32>
    %9 = tpu.matmul %0, %8, %cst_10 {dimension_numbers = #tpu.dot_dimension_numbers<[1], [0], [0], [1], [0, 0, 1, 1], [], []>} : vector<4x64xf32>, vector<64x32xf32>, vector<4x32xf32> -> vector<4x32xf32>
    %c0_11 = arith.constant 0 : index
    %c0_12 = arith.constant 0 : index
    %c0_13 = arith.constant 0 : index
    %10 = vector.load %arg6[%c0_11, %c0_12, %c0_13] : memref<2x4x32xf32, #tpu.memory_space<vmem>>, vector<1x4x32xf32>
    %11 = vector.shape_cast %10 : vector<1x4x32xf32> to vector<4x32xf32>
    %12 = vector.shape_cast %9 : vector<4x32xf32> to vector<1x4x32xf32>
    tpu.vector_store %arg6[%c0_11, %c0_12, %c0_13], %12 {strides = array<i32>} : memref<2x4x32xf32, #tpu.memory_space<vmem>>, vector<1x4x32xf32>,
    %c1 = arith.constant 1 : index
    %c0_14 = arith.constant 0 : index
    %c0_15 = arith.constant 0 : index
    %13 = vector.load %arg2[%c1, %c0_14, %c0_15] : memref<2x64x32xf32, #tpu.memory_space<vmem>>, vector<1x64x32xf32>
    %14 = vector.shape_cast %13 : vector<1x64x32xf32> to vector<64x32xf32>
    %cst_16 = arith.constant dense<0.000000e+00> : vector<4x32xf32>
    %15 = tpu.matmul %0, %14, %cst_16 {dimension_numbers = #tpu.dot_dimension_numbers<[1], [0], [0], [1], [0, 0, 1, 1], [], []>} : vector<4x64xf32>, vector<64x32xf32>, vector<4x32xf32> -> vector<4x32xf32>
    %c1_17 = arith.constant 1 : index
    %c0_18 = arith.constant 0 : index
    %c0_19 = arith.constant 0 : index
    %16 = vector.load %arg5[%c1_17, %c0_18, %c0_19] : memref<2x4x32xf32, #tpu.memory_space<vmem>>, vector<1x4x32xf32>
    %17 = vector.shape_cast %16 : vector<1x4x32xf32> to vector<4x32xf32>
    %18 = vector.shape_cast %15 : vector<4x32xf32> to vector<1x4x32xf32>
    tpu.vector_store %arg5[%c1_17, %c0_18, %c0_19], %18 {strides = array<i32>} : memref<2x4x32xf32, #tpu.memory_space<vmem>>, vector<1x4x32xf32>,
    %c1_20 = arith.constant 1 : index
    %c0_21 = arith.constant 0 : index
    %c0_22 = arith.constant 0 : index
    %19 = vector.load %arg3[%c1_20, %c0_21, %c0_22] : memref<2x64x32xf32, #tpu.memory_space<vmem>>, vector<1x64x32xf32>
    %20 = vector.shape_cast %19 : vector<1x64x32xf32> to vector<64x32xf32>
    %cst_23 = arith.constant dense<0.000000e+00> : vector<4x32xf32>
    %21 = tpu.matmul %0, %20, %cst_23 {dimension_numbers = #tpu.dot_dimension_numbers<[1], [0], [0], [1], [0, 0, 1, 1], [], []>} : vector<4x64xf32>, vector<64x32xf32>, vector<4x32xf32> -> vector<4x32xf32>
    %c1_24 = arith.constant 1 : index
    %c0_25 = arith.constant 0 : index
    %c0_26 = arith.constant 0 : index
    %22 = vector.load %arg6[%c1_24, %c0_25, %c0_26] : memref<2x4x32xf32, #tpu.memory_space<vmem>>, vector<1x4x32xf32>
    %23 = vector.shape_cast %22 : vector<1x4x32xf32> to vector<4x32xf32>
    %24 = vector.shape_cast %21 : vector<4x32xf32> to vector<1x4x32xf32>
    tpu.vector_store %arg6[%c1_24, %c0_25, %c0_26], %24 {strides = array<i32>} : memref<2x4x32xf32, #tpu.memory_space<vmem>>, vector<1x4x32xf32>,
    %c0_27 = arith.constant 0 : index
    %c0_28 = arith.constant 0 : index
    %c0_29 = arith.constant 0 : index
    %25 = vector.load %arg5[%c0_27, %c0_28, %c0_29] : memref<2x4x32xf32, #tpu.memory_space<vmem>>, vector<2x4x32xf32>
    %c0_30 = arith.constant 0 : index
    %c0_31 = arith.constant 0 : index
    %c0_32 = arith.constant 0 : index
    %26 = vector.load %arg6[%c0_30, %c0_31, %c0_32] : memref<2x4x32xf32, #tpu.memory_space<vmem>>, vector<2x4x32xf32>
    "tpu.trace_start"() <{level = 10 : i32, message = "bid,bjd->bij"}> : () -> ()
    %cst_33 = arith.constant dense<0.000000e+00> : vector<2x4x4xf32>
    %27 = tpu.matmul %25, %26, %cst_33 {dimension_numbers = #tpu.dot_dimension_numbers<[2], [2], [1], [1], [0, 0, 0, 1, 1, 1], [0], [0]>} : vector<2x4x32xf32>, vector<2x4x32xf32>, vector<2x4x4xf32> -> vector<2x4x4xf32>
    %cst_34 = arith.constant dense<0.000000e+00> : vector<2x4x4xf32>
    %28 = tpu.matmul %26, %25, %cst_34 {dimension_numbers = #tpu.dot_dimension_numbers<[2], [2], [1], [1], [0, 0, 0, 1, 1, 1], [0], [0]>} : vector<2x4x32xf32>, vector<2x4x32xf32>, vector<2x4x4xf32> -> vector<2x4x4xf32>
    "tpu.trace_stop"() : () -> ()
    %29 = tpu.iota {dimensions = array<i32: 1>} : vector<4x4xi32>
    %cst_35 = arith.constant dense<0xFF800000> : vector<2x4xf32>
    %30 = vector.multi_reduction <maximumf>, %27, %cst_35 [2] : vector<2x4x4xf32> to vector<2x4xf32>
    %31 = vector.shape_cast %30 : vector<2x4xf32> to vector<2x4x1xf32>
    %32 = vector.broadcast %31 : vector<2x4x1xf32> to vector<2x4x4xf32>
    %33 = arith.cmpf oeq, %27, %32 : vector<2x4x4xf32>
    %c4_i32 = arith.constant 4 : i32
    %34 = vector.shape_cast %29 : vector<4x4xi32> to vector<1x4x4xi32>
    %35 = vector.broadcast %34 : vector<1x4x4xi32> to vector<2x4x4xi32>
    %36 = vector.broadcast %c4_i32 : i32 to vector<2x4x4xi32>
    %37 = arith.select %33, %35, %36 : vector<2x4x4xi1>, vector<2x4x4xi32>
    %cst_36 = arith.constant dense<2147483647> : vector<2x4xi32>
    %38 = vector.multi_reduction <minsi>, %37, %cst_36 [2] : vector<2x4x4xi32> to vector<2x4xi32>
    %39 = vector.shape_cast %38 : vector<2x4xi32> to vector<2x4x1xi32>
    %40 = vector.shape_cast %29 : vector<4x4xi32> to vector<1x4x4xi32>
    %41 = vector.broadcast %40 : vector<1x4x4xi32> to vector<2x4x4xi32>
    %42 = vector.broadcast %39 : vector<2x4x1xi32> to vector<2x4x4xi32>
    %43 = arith.cmpi eq, %41, %42 : vector<2x4x4xi32>
    %cst_37 = arith.constant 1.000000e+00 : f32
    %cst_38 = arith.constant 0.000000e+00 : f32
    %44 = vector.broadcast %cst_37 : f32 to vector<2x4x4xf32>
    %45 = vector.broadcast %cst_38 : f32 to vector<2x4x4xf32>
    %46 = arith.select %43, %44, %45 : vector<2x4x4xi1>, vector<2x4x4xf32>
    %47 = arith.subf %46, %27 : vector<2x4x4xf32>
    %48 = arith.addf %47, %27 : vector<2x4x4xf32>
    %c0_39 = arith.constant 0 : index
    %c0_40 = arith.constant 0 : index
    %c0_41 = arith.constant 0 : index
    %c0_42 = arith.constant 0 : index
    %49 = vector.load %arg4[%c0_39, %c0_40, %c0_41, %c0_42] : memref<2x2x4x4xf32, #tpu.memory_space<vmem>>, vector<1x2x4x4xf32>
    %50 = vector.shape_cast %49 : vector<1x2x4x4xf32> to vector<2x4x4xf32>
    %51 = vector.shape_cast %48 : vector<2x4x4xf32> to vector<1x2x4x4xf32>
    tpu.vector_store %arg4[%c0_39, %c0_40, %c0_41, %c0_42], %51 {strides = array<i32>} : memref<2x2x4x4xf32, #tpu.memory_space<vmem>>, vector<1x2x4x4xf32>,
    %cst_43 = arith.constant dense<0xFF800000> : vector<2x4xf32>
    %52 = vector.multi_reduction <maximumf>, %28, %cst_43 [2] : vector<2x4x4xf32> to vector<2x4xf32>
    %53 = vector.shape_cast %52 : vector<2x4xf32> to vector<2x4x1xf32>
    %54 = vector.broadcast %53 : vector<2x4x1xf32> to vector<2x4x4xf32>
    %55 = arith.cmpf oeq, %28, %54 : vector<2x4x4xf32>
    %c4_i32_44 = arith.constant 4 : i32
    %56 = vector.shape_cast %29 : vector<4x4xi32> to vector<1x4x4xi32>
    %57 = vector.broadcast %56 : vector<1x4x4xi32> to vector<2x4x4xi32>
    %58 = vector.broadcast %c4_i32_44 : i32 to vector<2x4x4xi32>
    %59 = arith.select %55, %57, %58 : vector<2x4x4xi1>, vector<2x4x4xi32>
    %cst_45 = arith.constant dense<2147483647> : vector<2x4xi32>
    %60 = vector.multi_reduction <minsi>, %59, %cst_45 [2] : vector<2x4x4xi32> to vector<2x4xi32>
    %61 = vector.shape_cast %60 : vector<2x4xi32> to vector<2x4x1xi32>
    %62 = vector.shape_cast %29 : vector<4x4xi32> to vector<1x4x4xi32>
    %63 = vector.broadcast %62 : vector<1x4x4xi32> to vector<2x4x4xi32>
    %64 = vector.broadcast %61 : vector<2x4x1xi32> to vector<2x4x4xi32>
    %65 = arith.cmpi eq, %63, %64 : vector<2x4x4xi32>
    %cst_46 = arith.constant 1.000000e+00 : f32
    %cst_47 = arith.constant 0.000000e+00 : f32
    %66 = vector.broadcast %cst_46 : f32 to vector<2x4x4xf32>
    %67 = vector.broadcast %cst_47 : f32 to vector<2x4x4xf32>
    %68 = arith.select %65, %66, %67 : vector<2x4x4xi1>, vector<2x4x4xf32>
    %69 = arith.subf %68, %28 : vector<2x4x4xf32>
    %70 = arith.addf %69, %28 : vector<2x4x4xf32>
    %c1_48 = arith.constant 1 : index
    %c0_49 = arith.constant 0 : index
    %c0_50 = arith.constant 0 : index
    %c0_51 = arith.constant 0 : index
    %71 = vector.load %arg4[%c1_48, %c0_49, %c0_50, %c0_51] : memref<2x2x4x4xf32, #tpu.memory_space<vmem>>, vector<1x2x4x4xf32>
    %72 = vector.shape_cast %71 : vector<1x2x4x4xf32> to vector<2x4x4xf32>
    %73 = vector.shape_cast %70 : vector<2x4x4xf32> to vector<1x2x4x4xf32>
    tpu.vector_store %arg4[%c1_48, %c0_49, %c0_50, %c0_51], %73 {strides = array<i32>} : memref<2x2x4x4xf32, #tpu.memory_space<vmem>>, vector<1x2x4x4xf32>,
    return
  }
  func.func @transform_0(%arg0: i32) -> (i32, i32) {
    %c0_i32 = arith.constant 0 : i32
    %c0_i32_0 = arith.constant 0 : i32
    %c0_i32_1 = arith.constant 0 : i32
    return %c0_i32, %c0_i32_0 : i32, i32
  }
  func.func @transform_1(%arg0: i32) -> (i32, i32, i32) {
    %c0_i32 = arith.constant 0 : i32
    %c0_i32_0 = arith.constant 0 : i32
    %c0_i32_1 = arith.constant 0 : i32
    return %arg0, %c0_i32, %c0_i32_0 : i32, i32, i32
  }
  func.func @transform_2(%arg0: i32) -> (i32, i32, i32) {
    %c0_i32 = arith.constant 0 : i32
    %c0_i32_0 = arith.constant 0 : i32
    %c0_i32_1 = arith.constant 0 : i32
    return %arg0, %c0_i32, %c0_i32_0 : i32, i32, i32
  }
  func.func @transform_3(%arg0: i32) -> (i32, i32, i32, i32) {
    %c0_i32 = arith.constant 0 : i32
    %c0_i32_0 = arith.constant 0 : i32
    %c0_i32_1 = arith.constant 0 : i32
    %c0_i32_2 = arith.constant 0 : i32
    return %c0_i32, %arg0, %c0_i32_0, %c0_i32_1 : i32, i32, i32, i32
  }
}

</mosaic_0001>

<llo_original>
// kernel: tpu_custom_call.1
$region0: #{tpu_custom_call.1}
  #allocation0 [shape = 'u32[]', space=smem, size = 0x4, offset = 0x4, fixed_abs, tag = 'smem constant byte address 0x4 - core index']
  #allocation1 [shape = 'u32[72,128]{1,0:T(1,128)}', space=vmem, size = 0x9000, scoped, tag = 'internal scratch']
  #allocation2 [shape = 'f32[2,4,32]{2,1,0:T(4,128)}', space=vmem, size = 0x1000, scoped, tag = 'scratch operand']
  #allocation3 [shape = 'f32[2,4,32]{2,1,0:T(4,128)}', space=vmem, size = 0x1000, scoped, tag = 'scratch operand']
  %s0 = inlined_call_operand.vmem [shape: f32[4,64], index: 0, kind: input, shape index: {}]
  %s1 = inlined_call_operand.vmem [shape: f32[2,64,32], index: 1, kind: input, shape index: {}]
  %s2 = inlined_call_operand.vmem [shape: f32[2,64,32], index: 2, kind: input, shape index: {}]
  %s3 = inlined_call_operand.hbm [shape: f32[2,2,4,4], index: 3, kind: output, shape index: {}]
  %s4 = sld [smem:[#allocation0]]
  $region22: #{tpu_custom_call.1} parent=0
    _
  %s6 = ssub.s32 1, %s4
  %s7 = scalar_select 0, %s6, %s4
  $region1: #{tpu_custom_call.1} parent=0
    #allocation4 [shape = 'u8[8192]{0}', space=vmem, size = 0x2000, scoped, tag = 'output window, operand 0, single buffered']
    #allocation5 [shape = 's32[1]{0}', space=sflag, size = 0x4, scoped, tag = 'scoped memory for tpu_custom_call.1']
    %8 = vsyncpa [#allocation5], 0
    // Predicated region
    $region2: #{tpu_custom_call.1} parent=1 // pred_check
      _
    $region3: #{tpu_custom_call.1} parent=1 // pred_check_branch
      %10 = sbr.rel (0) target = $region5
    $region4: #{tpu_custom_call.1} parent=1 // pred_region
      _
    $region5: #{tpu_custom_call.1} parent=1 // pred_fallthru
      _
    // Predicated region
    $region6: #{tpu_custom_call.1} parent=1 // pred_check
      _
    $region7: #{tpu_custom_call.1} parent=1 // pred_check_branch
      %12 = sbr.rel (0) target = $region9
    $region8: #{tpu_custom_call.1} parent=1 // pred_region
      _
    $region9: #{tpu_custom_call.1} parent=1 // pred_fallthru
      _
    // Predicated region
    $region10: #{tpu_custom_call.1} parent=1 // pred_check
      _
    $region11: #{tpu_custom_call.1} parent=1 // pred_check_branch
      %14 = sbr.rel (0) target = $region13
    $region12: #{tpu_custom_call.1} parent=1 // pred_region
      _
    $region13: #{tpu_custom_call.1} parent=1 // pred_fallthru
      _
    %v15 = vld [vmem:[%s0] sm:$0xf]
    %v16 = vld [vmem:[%s1] sm:$0xff]
    %v17 = vld [vmem:[%s1 + $0x8] sm:$0xff]
    %v18 = vld [vmem:[%s1 + $0x10] sm:$0xff]
    %v19 = vld [vmem:[%s1 + $0x18] sm:$0xff]
    %v20 = vld [vmem:[%s1 + $0x20] sm:$0xff]
    %v21 = vld [vmem:[%s1 + $0x28] sm:$0xff]
    %v22 = vld [vmem:[%s1 + $0x30] sm:$0xff]
    %v23 = vld [vmem:[%s1 + $0x38] sm:$0xff]
    %vm24 = vcmask 523264
    %v26 = vsel %vm24, %v15, 0
    %28 = vmatpush.msra.mxu0 0.0
    %29 = vmatpush.msra.mxu0 0.0
    %30 = vmatpush.msra.mxu0 0.0
    %31 = vmatpush.msra.mxu0 0.0
    %32 = vmatpush.msra.mxu0 0.0
    %33 = vmatpush.msra.mxu0 0.0
    %34 = vmatpush.msra.mxu0 0.0
    %35 = vmatpush.msra.mxu0 0.0
    %36 = vmatpush.msra.mxu0 %v23
    %37 = vmatpush.msra.mxu0 %v22
    %38 = vmatpush.msra.mxu0 %v21
    %39 = vmatpush.msra.mxu0 %v20
    %40 = vmatpush.msra.mxu0 %v19
    %41 = vmatpush.msra.mxu0 %v18
    %42 = vmatpush.msra.mxu0 %v17
    %43 = vmatpush.msra.mxu0 %v16
    %44 = vmatmul.f32.gmra.mxu0 %v26
    %v45 = vpop.f32.mrf.mxu0
    %v46 = vadd.f32 0.0, %v45
    %47 = vdwg.mxu0
    %vm48 = vcmask 257024
    %49 = vst.msk [vmem:[#allocation2] sm:$0xf] %vm48, %v46
    %v50 = vld [vmem:[%s2] sm:$0xff]
    %v51 = vld [vmem:[%s2 + $0x8] sm:$0xff]
    %v52 = vld [vmem:[%s2 + $0x10] sm:$0xff]
    %v53 = vld [vmem:[%s2 + $0x18] sm:$0xff]
    %v54 = vld [vmem:[%s2 + $0x20] sm:$0xff]
    %v55 = vld [vmem:[%s2 + $0x28] sm:$0xff]
    %v56 = vld [vmem:[%s2 + $0x30] sm:$0xff]
    %v57 = vld [vmem:[%s2 + $0x38] sm:$0xff]
    %58 = vmatpush.msra.mxu0 0.0
    %59 = vmatpush.msra.mxu0 0.0
    %60 = vmatpush.msra.mxu0 0.0
    %61 = vmatpush.msra.mxu0 0.0
    %62 = vmatpush.msra.mxu0 0.0
    %63 = vmatpush.msra.mxu0 0.0
    %64 = vmatpush.msra.mxu0 0.0
    %65 = vmatpush.msra.mxu0 0.0
    %66 = vmatpush.msra.mxu0 %v57
    %67 = vmatpush.msra.mxu0 %v56
    %68 = vmatpush.msra.mxu0 %v55
    %69 = vmatpush.msra.mxu0 %v54
    %70 = vmatpush.msra.mxu0 %v53
    %71 = vmatpush.msra.mxu0 %v52
    %72 = vmatpush.msra.mxu0 %v51
    %73 = vmatpush.msra.mxu0 %v50
    %74 = vmatmul.f32.gmra.mxu0 %v26
    %v75 = vpop.f32.mrf.mxu0
    %v76 = vadd.f32 0.0, %v75
    %77 = vdwg.mxu0
    %78 = vst.msk [vmem:[#allocation3] sm:$0xf] %vm48, %v76
    %s79 = scalar_lea.vmem %s1, 64
    %v80 = vld [vmem:[%s79] sm:$0xff]
    %v81 = vld [vmem:[%s79 + $0x8] sm:$0xff]
    %v82 = vld [vmem:[%s79 + $0x10] sm:$0xff]
    %v83 = vld [vmem:[%s79 + $0x18] sm:$0xff]
    %v84 = vld [vmem:[%s79 + $0x20] sm:$0xff]
    %v85 = vld [vmem:[%s79 + $0x28] sm:$0xff]
    %v86 = vld [vmem:[%s79 + $0x30] sm:$0xff]
    %v87 = vld [vmem:[%s79 + $0x38] sm:$0xff]
    %88 = vmatpush.msra.mxu0 0.0
    %89 = vmatpush.msra.mxu0 0.0
    %90 = vmatpush.msra.mxu0 0.0
    %91 = vmatpush.msra.mxu0 0.0
    %92 = vmatpush.msra.mxu0 0.0
    %93 = vmatpush.msra.mxu0 0.0
    %94 = vmatpush.msra.mxu0 0.0
    %95 = vmatpush.msra.mxu0 0.0
    %96 = vmatpush.msra.mxu0 %v87
    %97 = vmatpush.msra.mxu0 %v86
    %98 = vmatpush.msra.mxu0 %v85
    %99 = vmatpush.msra.mxu0 %v84
    %100 = vmatpush.msra.mxu0 %v83
    %101 = vmatpush.msra.mxu0 %v82
    %102 = vmatpush.msra.mxu0 %v81
    %103 = vmatpush.msra.mxu0 %v80
    %104 = vmatmul.f32.gmra.mxu0 %v26
    %v105 = vpop.f32.mrf.mxu0
    %v106 = vadd.f32 0.0, %v105
    %107 = vdwg.mxu0
    %s108 = scalar_lea.vmem [#allocation2], 4
    %109 = vst.msk [vmem:[%s108] sm:$0xf] %vm48, %v106
    %s110 = scalar_lea.vmem %s2, 64
    %v111 = vld [vmem:[%s110] sm:$0xff]
    %v112 = vld [vmem:[%s110 + $0x8] sm:$0xff]
    %v113 = vld [vmem:[%s110 + $0x10] sm:$0xff]
    %v114 = vld [vmem:[%s110 + $0x18] sm:$0xff]
    %v115 = vld [vmem:[%s110 + $0x20] sm:$0xff]
    %v116 = vld [vmem:[%s110 + $0x28] sm:$0xff]
    %v117 = vld [vmem:[%s110 + $0x30] sm:$0xff]
    %v118 = vld [vmem:[%s110 + $0x38] sm:$0xff]
    %119 = vmatpush.msra.mxu0 0.0
    %120 = vmatpush.msra.mxu0 0.0
    %121 = vmatpush.msra.mxu0 0.0
    %122 = vmatpush.msra.mxu0 0.0
    %123 = vmatpush.msra.mxu0 0.0
    %124 = vmatpush.msra.mxu0 0.0
    %125 = vmatpush.msra.mxu0 0.0
    %126 = vmatpush.msra.mxu0 0.0
    %127 = vmatpush.msra.mxu0 %v118
    %128 = vmatpush.msra.mxu0 %v117
    %129 = vmatpush.msra.mxu0 %v116
    %130 = vmatpush.msra.mxu0 %v115
    %131 = vmatpush.msra.mxu0 %v114
    %132 = vmatpush.msra.mxu0 %v113
    %133 = vmatpush.msra.mxu0 %v112
    %134 = vmatpush.msra.mxu0 %v111
    %135 = vmatmul.f32.gmra.mxu0 %v26
    %v136 = vpop.f32.mrf.mxu0
    %v137 = vadd.f32 0.0, %v136
    %138 = vdwg.mxu0
    %s139 = scalar_lea.vmem [#allocation3], 4
    %140 = vst.msk [vmem:[%s139] sm:$0xf] %vm48, %v137
    %v141 = vld [vmem:[#allocation2] sm:$0xf]
    %v142 = vld [vmem:[#allocation2 + $0x4] sm:$0xf]
    %v143 = vld [vmem:[#allocation3] sm:$0xf]
    %v144 = vld [vmem:[#allocation3 + $0x4] sm:$0xf]
    %vm145 = vcmask 261120
    %v147 = vsel %vm145, %v141, 0
    %v150 = vsel %vm145, %v143, 0
    %152 = vmatpush.xpose.msra.mxu0 0.0
    %153 = vmatpush.xpose.msra.mxu0 0.0
    %154 = vmatpush.xpose.msra.mxu0 0.0
    %155 = vmatpush.xpose.msra.mxu0 0.0
    %156 = vmatpush.xpose.msra.mxu0 0.0
    %157 = vmatpush.xpose.msra.mxu0 0.0
    %158 = vmatpush.xpose.msra.mxu0 0.0
    %159 = vmatpush.xpose.msra.mxu0 0.0
    %160 = vmatpush.xpose.msra.mxu0 0.0
    %161 = vmatpush.xpose.msra.mxu0 0.0
    %162 = vmatpush.xpose.msra.mxu0 0.0
    %163 = vmatpush.xpose.msra.mxu0 0.0
    %164 = vmatpush.xpose.msra.mxu0 0.0
    %165 = vmatpush.xpose.msra.mxu0 0.0
    %166 = vmatpush.xpose.msra.mxu0 0.0
    %167 = vmatpush.xpose.msra.mxu0 %v150
    %168 = vmatmul.f32.gmra.mxu0 %v147
    %v169 = vpop.f32.mrf.mxu0
    %v170 = vadd.f32 0.0, %v169
    %171 = vdwg.mxu0
    %v173 = vsel %vm145, %v142, 0
    %v176 = vsel %vm145, %v144, 0
    %178 = vmatpush.xpose.msra.mxu0 0.0
    %179 = vmatpush.xpose.msra.mxu0 0.0
    %180 = vmatpush.xpose.msra.mxu0 0.0
    %181 = vmatpush.xpose.msra.mxu0 0.0
    %182 = vmatpush.xpose.msra.mxu0 0.0
    %183 = vmatpush.xpose.msra.mxu0 0.0
    %184 = vmatpush.xpose.msra.mxu0 0.0
    %185 = vmatpush.xpose.msra.mxu0 0.0
    %186 = vmatpush.xpose.msra.mxu0 0.0
    %187 = vmatpush.xpose.msra.mxu0 0.0
    %188 = vmatpush.xpose.msra.mxu0 0.0
    %189 = vmatpush.xpose.msra.mxu0 0.0
    %190 = vmatpush.xpose.msra.mxu0 0.0
    %191 = vmatpush.xpose.msra.mxu0 0.0
    %192 = vmatpush.xpose.msra.mxu0 0.0
    %193 = vmatpush.xpose.msra.mxu0 %v176
    %194 = vmatmul.f32.gmra.mxu0 %v173
    %v195 = vpop.f32.mrf.mxu0
    %v196 = vadd.f32 0.0, %v195
    %197 = vdwg.mxu0
    %198 = vmatpush.xpose.msra.mxu0 0.0
    %199 = vmatpush.xpose.msra.mxu0 0.0
    %200 = vmatpush.xpose.msra.mxu0 0.0
    %201 = vmatpush.xpose.msra.mxu0 0.0
    %202 = vmatpush.xpose.msra.mxu0 0.0
    %203 = vmatpush.xpose.msra.mxu0 0.0
    %204 = vmatpush.xpose.msra.mxu0 0.0
    %205 = vmatpush.xpose.msra.mxu0 0.0
    %206 = vmatpush.xpose.msra.mxu0 0.0
    %207 = vmatpush.xpose.msra.mxu0 0.0
    %208 = vmatpush.xpose.msra.mxu0 0.0
    %209 = vmatpush.xpose.msra.mxu0 0.0
    %210 = vmatpush.xpose.msra.mxu0 0.0
    %211 = vmatpush.xpose.msra.mxu0 0.0
    %212 = vmatpush.xpose.msra.mxu0 0.0
    %213 = vmatpush.xpose.msra.mxu0 %v147
    %214 = vmatmul.f32.gmra.mxu0 %v150
    %v215 = vpop.f32.mrf.mxu0
    %v216 = vadd.f32 0.0, %v215
    %217 = vdwg.mxu0
    %218 = vmatpush.xpose.msra.mxu0 0.0
    %219 = vmatpush.xpose.msra.mxu0 0.0
    %220 = vmatpush.xpose.msra.mxu0 0.0
    %221 = vmatpush.xpose.msra.mxu0 0.0
    %222 = vmatpush.xpose.msra.mxu0 0.0
    %223 = vmatpush.xpose.msra.mxu0 0.0
    %224 = vmatpush.xpose.msra.mxu0 0.0
    %225 = vmatpush.xpose.msra.mxu0 0.0
    %226 = vmatpush.xpose.msra.mxu0 0.0
    %227 = vmatpush.xpose.msra.mxu0 0.0
    %228 = vmatpush.xpose.msra.mxu0 0.0
    %229 = vmatpush.xpose.msra.mxu0 0.0
    %230 = vmatpush.xpose.msra.mxu0 0.0
    %231 = vmatpush.xpose.msra.mxu0 0.0
    %232 = vmatpush.xpose.msra.mxu0 0.0
    %233 = vmatpush.xpose.msra.mxu0 %v173
    %234 = vmatmul.f32.gmra.mxu0 %v176
    %v235 = vpop.f32.mrf.mxu0
    %v236 = vadd.f32 0.0, %v235
    %237 = vdwg.mxu0
    %v238 = vlaneseq
    %v239 = vand.u32 %v238, 127
    %vm240 = vcmask 27648
    %v241 = vsel %vm240, %v170, -inf
    %242 = vmax.xlane.f32.xlu0 %v241
    %v243 = vpop.xlane.xlu0 %242
    %v244 = vsel %vm240, %v196, -inf
    %245 = vmax.xlane.f32.xlu0 %v244
    %v246 = vpop.xlane.xlu0 %245
    %vm247 = vcmp.eq.f32.partialorder %v170, %v243
    %vm248 = vcmp.eq.f32.partialorder %v196, %v246
    %v249 = vsel %vm247, %v239, 4
    %v250 = vsel %vm248, %v239, 4
    %v251 = vsel %vm240, %v249, 2147483647
    %v252 = vand.u32 %v251, 65535
    %v253 = vshra.s32 %v251, 16
    %v254 = vcvt.s32.f32 %v252
    %v255 = vcvt.s32.f32 %v253
    %256 = vmin.xlane.f32.xlu0 %v255
    %v257 = vpop.xlane.xlu0 %256
    %vm258 = vcmp.eq.f32.partialorder %v255, %v257
    %v259 = vsel %vm258, %v254, inf
    %260 = vmin.xlane.f32.xlu0 %v259
    %v261 = vpop.xlane.xlu0 %260
    %v262 = vcvt.f32.s32 %v261
    %v263 = vcvt.f32.s32 %v257
    %v264 = vshll.u32 %v263, 16
    %v265 = vadd.s32 %v264, %v262
    %v266 = vsel %vm240, %v250, 2147483647
    %v267 = vand.u32 %v266, 65535
    %v268 = vshra.s32 %v266, 16
    %v269 = vcvt.s32.f32 %v267
    %v270 = vcvt.s32.f32 %v268
    %271 = vmin.xlane.f32.xlu0 %v270
    %v272 = vpop.xlane.xlu0 %271
    %vm273 = vcmp.eq.f32.partialorder %v270, %v272
    %v274 = vsel %vm273, %v269, inf
    %275 = vmin.xlane.f32.xlu0 %v274
    %v276 = vpop.xlane.xlu0 %275
    %v277 = vcvt.f32.s32 %v276
    %v278 = vcvt.f32.s32 %v272
    %v279 = vshll.u32 %v278, 16
    %v280 = vadd.s32 %v279, %v277
    %vm281 = vcmp.eq.s32.totalorder %v239, %v265
    %vm282 = vcmp.eq.s32.totalorder %v239, %v280
    %v283 = vsel %vm281, 1.0, 0.0
    %v284 = vsel %vm282, 1.0, 0.0
    %v285 = vsub.f32 %v283, %v170
    %v286 = vsub.f32 %v284, %v196
    %v287 = vadd.f32 %v285, %v170
    %v288 = vadd.f32 %v286, %v196
    %289 = vst.msk [vmem:[#allocation4] sm:$0xf] %vm240, %v287
    %290 = vst.msk [vmem:[#allocation4 + $0x4] sm:$0xf] %vm240, %v288
    %v291 = vsel %vm240, %v216, -inf
    %292 = vmax.xlane.f32.xlu0 %v291
    %v293 = vpop.xlane.xlu0 %292
    %v294 = vsel %vm240, %v236, -inf
    %295 = vmax.xlane.f32.xlu0 %v294
    %v296 = vpop.xlane.xlu0 %295
    %vm297 = vcmp.eq.f32.partialorder %v216, %v293
    %vm298 = vcmp.eq.f32.partialorder %v236, %v296
    %v299 = vsel %vm297, %v239, 4
    %v300 = vsel %vm298, %v239, 4
    %v301 = vsel %vm240, %v299, 2147483647
    %v302 = vand.u32 %v301, 65535
    %v303 = vshra.s32 %v301, 16
    %v304 = vcvt.s32.f32 %v302
    %v305 = vcvt.s32.f32 %v303
    %306 = vmin.xlane.f32.xlu0 %v305
    %v307 = vpop.xlane.xlu0 %306
    %vm308 = vcmp.eq.f32.partialorder %v305, %v307
    %v309 = vsel %vm308, %v304, inf
    %310 = vmin.xlane.f32.xlu0 %v309
    %v311 = vpop.xlane.xlu0 %310
    %v312 = vcvt.f32.s32 %v311
    %v313 = vcvt.f32.s32 %v307
    %v314 = vshll.u32 %v313, 16
    %v315 = vadd.s32 %v314, %v312
    %v316 = vsel %vm240, %v300, 2147483647
    %v317 = vand.u32 %v316, 65535
    %v318 = vshra.s32 %v316, 16
    %v319 = vcvt.s32.f32 %v317
    %v320 = vcvt.s32.f32 %v318
    %321 = vmin.xlane.f32.xlu0 %v320
    %v322 = vpop.xlane.xlu0 %321
    %vm323 = vcmp.eq.f32.partialorder %v320, %v322
    %v324 = vsel %vm323, %v319, inf
    %325 = vmin.xlane.f32.xlu0 %v324
    %v326 = vpop.xlane.xlu0 %325
    %v327 = vcvt.f32.s32 %v326
    %v328 = vcvt.f32.s32 %v322
    %v329 = vshll.u32 %v328, 16
    %v330 = vadd.s32 %v329, %v327
    %vm331 = vcmp.eq.s32.totalorder %v239, %v315
    %vm332 = vcmp.eq.s32.totalorder %v239, %v330
    %v333 = vsel %vm331, 1.0, 0.0
    %v334 = vsel %vm332, 1.0, 0.0
    %v335 = vsub.f32 %v333, %v216
    %v336 = vsub.f32 %v334, %v236
    %v337 = vadd.f32 %v335, %v216
    %v338 = vadd.f32 %v336, %v236
    %s339 = scalar_lea.vmem [#allocation4], 8
    %340 = vst.msk [vmem:[%s339] sm:$0xf] %vm240, %v337
    %341 = vst.msk [vmem:[%s339 + $0x4] sm:$0xf] %vm240, %v338
    // Predicated region
    $region14: #{tpu_custom_call.1} parent=1 // pred_check
      _
    $region15: #{tpu_custom_call.1} parent=1 // pred_check_branch
      %343 = sbr.rel (0) target = $region17
    $region16: #{tpu_custom_call.1} parent=1 // pred_region
      %345 = vsyncadd [#allocation5], 0
      %s346 = sshll.u32 [#allocation4], 4
      %s347 = int_to_ptr.vmem [resolvable:$true] %s346
      %s348 = sshll.u32 %s3, 4
      %s349 = int_to_ptr.hbm [resolvable:$true] %s348
      %354 = dma.vmem_to_hbm [thread:$0]  %s347, 256, %s349, [#allocation5], 64, 64, 4
    $region17: #{tpu_custom_call.1} parent=1 // pred_fallthru
      _
    // Predicated region
    $region18: #{tpu_custom_call.1} parent=1 // pred_check
      _
    $region19: #{tpu_custom_call.1} parent=1 // pred_check_branch
      %356 = sbr.rel (0) target = $region21
    $region20: #{tpu_custom_call.1} parent=1 // pred_region
      %358 = dma.done [#allocation5], 256
    $region21: #{tpu_custom_call.1} parent=1 // pred_fallthru
      _
    %359 = vsyncpa [#allocation5], 1

</llo_original>
